<compile_context>
chip_gen: v5e
topology: v5e:2x2
jax: 0.10.0
libtpu: 0.0.40
codegen_flags: <defaults>
</compile_context>

<pallas_src>
import functools

import jax
import jax.numpy as jnp
from jax.experimental import pallas as pl
from jax.experimental.pallas import tpu as pltpu


_LANE = 128                      # TPU vreg lane width
_SUBLANE = 8                     # f32 sublanes per vreg
_TARGET_BLOCK_BYTES = 4 << 20    # ~4 MiB per pipeline block (per array)
_VMEM_LIMIT_BYTES = 48 << 20     # 3 arrays x 2 buffers x 4 MiB = 24 MiB + headroom


# ----------------------------------------------------------------------------
# Pallas kernels
# ----------------------------------------------------------------------------
def _cfg_kernel_rows(scale_smem, out_ref, out_uncond_ref, res_ref):
    """3-D path: one (tile_rows, 128) sublane/lane-dense block per step.

    scale_smem is the scalar-prefetched (B,) f32 guidance scale in SMEM; the
    per-batch scalar is broadcast from an sreg (free vs. a VMEM lane broadcast).
    Combine in f32, cast on store.
    """
    s = scale_smem[pl.program_id(0)]                       # f32 scalar (SMEM)
    o = out_ref[...].astype(jnp.float32)                   # conditional
    ou = out_uncond_ref[...].astype(jnp.float32)           # unconditional
    res_ref[...] = (ou + s * (o - ou)).astype(res_ref.dtype)


def _cfg_kernel_flat(scale_ref, out_ref, out_uncond_ref, res_ref):
    """2-D fallback path (N not lane-aligned): (B, tile_n) blocks, scale (B,1)."""
    s = scale_ref[...].astype(jnp.float32)                 # (B, 1), resident
    o = out_ref[...].astype(jnp.float32)
    ou = out_uncond_ref[...].astype(jnp.float32)
    res_ref[...] = (ou + s * (o - ou)).astype(res_ref.dtype)


# ----------------------------------------------------------------------------
# Tile-size heuristics
# ----------------------------------------------------------------------------
def _sublane_multiple(itemsize):
    # 8 for f32, 16 for bf16, 32 for 8-bit types (native (8*4/itemsize, 128) tiles).
    return _SUBLANE * max(1, 4 // int(itemsize))


def _choose_tile_rows(rows, itemsize, batch, target_bytes):
    """Rows per (1, tile_rows, 128) block for the 3-D sublane-dense layout."""
    sub = _sublane_multiple(itemsize)
    max_rows = max(sub, (target_bytes // (_LANE * itemsize)) // sub * sub)
    if rows <= max_rows:
        # Whole per-batch slab fits one block.  If B == 1 the grid would be a
        # single step -> split rows so the v7x megacore has >= 2 steps to shard.
        if batch == 1 and rows >= 2 * sub:
            return (-(-(rows // 2) // sub)) * sub
        return rows
    # Prefer the largest multiple-of-sub divisor of rows (unmasked tail stores).
    t = max_rows
    while t >= sub:
        if rows % t == 0:
            return t
        t -= sub
    return max_rows  # ragged tail on the last row tile (masked, still correct)


def _choose_tile_n(batch, n, itemsize, target_bytes):
    """Lanes per (B, tile_n) block for the 2-D fallback layout."""
    if n <= _LANE:
        return n                                    # full extent (legal)
    sub = _sublane_multiple(itemsize)
    b_pad = (-(-batch // sub)) * sub                # VMEM pads B up to sublane multiple
    tile = max(_LANE, (target_bytes // (b_pad * itemsize)) // _LANE * _LANE)
    if n <= tile:
        return n                                    # whole row in one block
    t = tile
    while t >= _LANE:                               # prefer an exact divisor of n
        if n % t == 0:
            return t
        t -= _LANE
    return tile                                     # masked tail on last step


# ----------------------------------------------------------------------------
# CFG combine entry point
# ----------------------------------------------------------------------------
@functools.partial(jax.jit, static_argnames=("max_block_bytes",), donate_argnums=(1,))
def cfg_combine(out, out_uncond, scale, max_block_bytes=None):
    """out_uncond + scale[:,None,None,None] * (out - out_uncond), via Pallas.

    `out_uncond` is donated and aliased to the kernel output: the result is
    written in place of the (dead) unconditional output.  Callers must not
    read `out_uncond` after this returns.
    """
    assert out.shape == out_uncond.shape and out.dtype == out_uncond.dtype
    batch = out.shape[0]
    n = out.size // batch
    itemsize = int(out.dtype.itemsize)
    target = _TARGET_BLOCK_BYTES if max_block_bytes is None else int(max_block_bytes)

    scale_f32 = scale.reshape(batch).astype(jnp.float32)

    # Advisory cost: memory-bound elementwise combine.
    cost = pl.CostEstimate(
        flops=2 * batch * n,
        transcendentals=0,
        bytes_accessed=3 * batch * n * itemsize,
    )

    if n % _LANE == 0:
        # -------- primary 3-D sublane-dense path --------
        rows = n // _LANE
        tile_rows = _choose_tile_rows(rows, itemsize, batch, target)
        o3 = out.reshape(batch, rows, _LANE)
        u3 = out_uncond.reshape(batch, rows, _LANE)
        grid = (batch, pl.cdiv(rows, tile_rows))

        blk = pl.BlockSpec((None, tile_rows, _LANE), lambda b, i, s: (b, i, 0))
        res = pl.pallas_call(
            _cfg_kernel_rows,
            out_shape=jax.ShapeDtypeStruct((batch, rows, _LANE), out.dtype),
            grid_spec=pltpu.PrefetchScalarGridSpec(
                num_scalar_prefetch=1,            # scale -> SMEM
                grid=grid,
                in_specs=[blk, blk],              # conditional, unconditional
                out_specs=pl.BlockSpec((None, tile_rows, _LANE),
                                       lambda b, i, s: (b, i, 0)),
            ),
            # Result written in place of u3 (same index_map as the output, so
            # each grid step reads/writes the same block -> in-place safe).
            input_output_aliases={2: 0},
            compiler_params=pltpu.CompilerParams(
                dimension_semantics=("parallel", "parallel"),
                vmem_limit_bytes=_VMEM_LIMIT_BYTES),
            cost_estimate=cost,
        )(scale_f32, o3, u3)
        return res.reshape(out.shape)

    # -------- 2-D fallback path (N not a multiple of 128) --------
    flat = out.reshape(batch, n)
    flat_u = out_uncond.reshape(batch, n)
    tile_n = _choose_tile_n(batch, n, itemsize, target)
    grid = (pl.cdiv(n, tile_n),)

    res = pl.pallas_call(
        _cfg_kernel_flat,
        out_shape=jax.ShapeDtypeStruct((batch, n), out.dtype),
        grid=grid,
        in_specs=[
            pl.BlockSpec((batch, 1), lambda i: (0, 0)),        # scale (resident)
            pl.BlockSpec((batch, tile_n), lambda i: (0, i)),   # conditional
            pl.BlockSpec((batch, tile_n), lambda i: (0, i)),   # unconditional
        ],
        out_specs=pl.BlockSpec((batch, tile_n), lambda i: (0, i)),
        input_output_aliases={2: 0},
        compiler_params=pltpu.CompilerParams(
            dimension_semantics=("parallel",),
            vmem_limit_bytes=_VMEM_LIMIT_BYTES),
        cost_estimate=cost,
    )(scale_f32.reshape(batch, 1), flat, flat_u)
    return res.reshape(out.shape)


# ----------------------------------------------------------------------------
# Deterministic synthetic stand-in for the wrapped diffusion model (`self.model`)
# ----------------------------------------------------------------------------
class TinyMotionModel:
    """Minimal text-conditioned denoiser stub exposing the attributes the
    wrapper reads in __init__ (cond_mask_prob, translation, njoints, nfeats,
    data_rep, cond_mode, rot2xyz).  Forward: per-frame linear + timestep
    embedding + conditional embedding (zeroed when y['uncond'] is True)."""

    cond_mask_prob = 0.1
    translation = True
    njoints = 4
    nfeats = 4
    data_rep = "rot6d"
    cond_mode = "text"
    rot2xyz = None

    def __init__(self, key):
        F = self.njoints * self.nfeats
        k1, k2, k3, k4 = jax.random.split(key, 4)
        self.W = 0.1 * jax.random.normal(k1, (F, F), jnp.float32)
        self.b = 0.1 * jax.random.normal(k2, (F,), jnp.float32)
        self.t_proj = 0.1 * jax.random.normal(k3, (F,), jnp.float32)
        self.txt_proj = 0.1 * jax.random.normal(k4, (F,), jnp.float32)

    def __call__(self, x, timesteps, y):
        # x: (B, njoints, nfeats, nframes)
        B, J, Fe, T = x.shape
        F = J * Fe
        h = x.reshape(B, F, T).transpose(0, 2, 1)                  # (B, T, F)
        h = jnp.einsum("btf,fg->btg", h, self.W) + self.b          # linear
        t_emb = timesteps.astype(jnp.float32)[:, None, None] * self.t_proj
        cond_on = 0.0 if y.get("uncond", False) else 1.0
        c_emb = cond_on * self.txt_proj[None, None, :]
        h = h + t_emb + c_emb
        return h.transpose(0, 2, 1).reshape(B, J, Fe, T)


# ----------------------------------------------------------------------------
# ClassifierFreeSampleModel (JAX/Pallas port)
# ----------------------------------------------------------------------------
class ClassifierFreeSampleModel:
    def __init__(self, model):
        self.model = model
        assert self.model.cond_mask_prob > 0, (
            "Cannot run a guided diffusion on a model that has not been "
            "trained with no conditions"
        )
        self.rot2xyz = getattr(self.model, "rot2xyz", None)
        self.translation = self.model.translation
        self.njoints = self.model.njoints
        self.nfeats = self.model.nfeats
        self.data_rep = self.model.data_rep
        self.cond_mode = self.model.cond_mode

    def __call__(self, x, timesteps, y=None):
        cond_mode = self.model.cond_mode
        assert cond_mode in ["text", "action"]
        y_uncond = dict(y)                 # deepcopy semantics (flat dict here)
        y_uncond["uncond"] = True
        # TODO(synk): fusing the cond/uncond denoiser passes into one 2B-batch
        # forward is the dominant (2x) wall-time win; kept as two calls to
        # preserve the reference module's call semantics.
        # TODO(synk): for tiny tensors a plain-jnp combine (XLA-fused) would
        # avoid the pallas_call launch overhead; always using Pallas here so the
        # kernel path is exercised.
        out = self.model(x, timesteps, y)
        out_uncond = self.model(x, timesteps, y_uncond)
        # Hot path: CFG combine in Pallas (out_uncond is dead afterwards -> donated).
        return cfg_combine(out, out_uncond, y["scale"])


# ----------------------------------------------------------------------------
if __name__ == "__main__":
    key = jax.random.PRNGKey(0)
    k_model, k_x, k_t, k_s = jax.random.split(key, 4)

    inner = TinyMotionModel(k_model)
    cfg_model = ClassifierFreeSampleModel(inner)

    B, J, Fe, T = 2, inner.njoints, inner.nfeats, 256     # N = 4*4*256 = 4096 = 32*128
    x = jax.random.normal(k_x, (B, J, Fe, T), jnp.float32)
    timesteps = jax.random.randint(k_t, (B,), 0, 1000)
    scale = 1.0 + jax.random.uniform(k_s, (B,), jnp.float32) * 5.0
    y = {"scale": scale, "text_embed": None}

    # Plain-JAX reference.
    out_c = inner(x, timesteps, y)
    out_u = inner(x, timesteps, {**y, "uncond": True})
    ref = out_u + scale.reshape(-1, 1, 1, 1) * (out_c - out_u)

    # 1) Full wrapper path (3-D sublane-dense layout, one row-block per batch,
    #    grid (B, 1) -> batch axis shards across the v7x megacore).
    result = jax.block_until_ready(cfg_model(x, timesteps, y))
    assert result.shape == (B, J, Fe, T)
    assert jnp.allclose(result, ref, atol=1e-5, rtol=1e-5)

    # 2) Force small blocks -> multi-step pipelined grid (the streaming code
    #    path used at production tensor sizes).  out_uncond is donated, so a
    #    fresh copy is used.
    out_u2 = inner(x, timesteps, {**y, "uncond": True})
    result_tiled = jax.block_until_ready(
        cfg_combine(out_c, out_u2, scale, max_block_bytes=4096))
    assert jnp.allclose(result_tiled, ref, atol=1e-5, rtol=1e-5)

    # 3) N not a multiple of 128 -> exercises the 2-D fallback path.
    T3 = 50                                               # N = 800 (not lane aligned)
    x3 = jax.random.normal(k_x, (B, J, Fe, T3), jnp.float32)
    out_c3 = inner(x3, timesteps, y)
    out_u3 = inner(x3, timesteps, {**y, "uncond": True})
    ref3 = out_u3 + scale.reshape(-1, 1, 1, 1) * (out_c3 - out_u3)
    out_u3b = inner(x3, timesteps, {**y, "uncond": True})  # fresh (it is donated)
    result3 = jax.block_until_ready(cfg_combine(out_c3, out_u3b, scale))
    assert jnp.allclose(result3, ref3, atol=1e-5, rtol=1e-5)

    print("KERNEL_OK")
</pallas_src>

<mosaic_0001>
module attributes {stable_mosaic.version = 11 : i64} {
  func.func @_cfg_kernel_rows(%arg0: i32, %arg1: i32, %arg2: memref<2xf32, #tpu.memory_space<smem>>, %arg3: memref<1x32x128xf32, #tpu.memory_space<vmem>>, %arg4: memref<1x32x128xf32, #tpu.memory_space<vmem>>, %arg5: memref<1x32x128xf32, #tpu.memory_space<vmem>>) attributes {dimension_semantics = [#tpu.dimension_semantics<parallel>, #tpu.dimension_semantics<parallel>], iteration_bounds = array<i64: 2, 1>, scalar_prefetch = 1 : i64, scratch_operands = 0 : i64, tpu.core_type = #tpu.core_type<tc>, window_params = [{transform_indices = @transform_0, window_bounds = array<i64: 1, 32, 128>}, {transform_indices = @transform_1, window_bounds = array<i64: 1, 32, 128>}, {transform_indices = @transform_2, window_bounds = array<i64: 1, 32, 128>}]} {
    %0 = arith.index_cast %arg0 : i32 to index
    %1 = memref.load %arg2[%0] : memref<2xf32, #tpu.memory_space<smem>>
    %c0 = arith.constant 0 : index
    %c0_0 = arith.constant 0 : index
    %c0_1 = arith.constant 0 : index
    %2 = vector.load %arg3[%c0, %c0_0, %c0_1] : memref<1x32x128xf32, #tpu.memory_space<vmem>>, vector<1x32x128xf32>
    %3 = vector.shape_cast %2 : vector<1x32x128xf32> to vector<32x128xf32>
    %c0_2 = arith.constant 0 : index
    %c0_3 = arith.constant 0 : index
    %c0_4 = arith.constant 0 : index
    %4 = vector.load %arg4[%c0_2, %c0_3, %c0_4] : memref<1x32x128xf32, #tpu.memory_space<vmem>>, vector<1x32x128xf32>
    %5 = vector.shape_cast %4 : vector<1x32x128xf32> to vector<32x128xf32>
    %6 = arith.subf %3, %5 : vector<32x128xf32>
    %7 = vector.broadcast %1 : f32 to vector<32x128xf32>
    %8 = arith.mulf %7, %6 : vector<32x128xf32>
    %9 = arith.addf %5, %8 : vector<32x128xf32>
    %c0_5 = arith.constant 0 : index
    %c0_6 = arith.constant 0 : index
    %c0_7 = arith.constant 0 : index
    %10 = vector.load %arg5[%c0_5, %c0_6, %c0_7] : memref<1x32x128xf32, #tpu.memory_space<vmem>>, vector<1x32x128xf32>
    %11 = vector.shape_cast %10 : vector<1x32x128xf32> to vector<32x128xf32>
    %12 = vector.shape_cast %9 : vector<32x128xf32> to vector<1x32x128xf32>
    tpu.vector_store %arg5[%c0_5, %c0_6, %c0_7], %12 {strides = array<i32>} : memref<1x32x128xf32, #tpu.memory_space<vmem>>, vector<1x32x128xf32>,
    return
  }
  func.func @transform_0(%arg0: i32, %arg1: i32, %arg2: memref<2xf32, #tpu.memory_space<smem>>) -> (i32, i32, i32) {
    %c0_i32 = arith.constant 0 : i32
    %c0_i32_0 = arith.constant 0 : i32
    return %arg0, %arg1, %c0_i32 : i32, i32, i32
  }
  func.func @transform_1(%arg0: i32, %arg1: i32, %arg2: memref<2xf32, #tpu.memory_space<smem>>) -> (i32, i32, i32) {
    %c0_i32 = arith.constant 0 : i32
    %c0_i32_0 = arith.constant 0 : i32
    return %arg0, %arg1, %c0_i32 : i32, i32, i32
  }
  func.func @transform_2(%arg0: i32, %arg1: i32, %arg2: memref<2xf32, #tpu.memory_space<smem>>) -> (i32, i32, i32) {
    %c0_i32 = arith.constant 0 : i32
    %c0_i32_0 = arith.constant 0 : i32
    return %arg0, %arg1, %c0_i32 : i32, i32, i32
  }
}

</mosaic_0001>

<llo_original>
// kernel: cfg_combine.1
$region0: #{cfg_combine.1}
  #allocation0 [shape = 'u32[]', space=smem, size = 0x4, offset = 0x4, fixed_abs, tag = 'smem constant byte address 0x4 - core index']
  #allocation1 [shape = 'u32[72,128]{1,0:T(1,128)}', space=vmem, size = 0x9000, scoped, tag = 'internal scratch']
  #allocation2 [shape = 's32[1]{0}', space=sflag, size = 0x4, scoped, tag = 'scoped memory for cfg_combine.1']
  #allocation3 [shape = 'u8[512]{0}', space=smem, size = 0x200, scoped, tag = 'prefetched SMEM operand 0']
  %s0 = inlined_call_operand.vmem [shape: f32[2], index: 0, kind: input, shape index: {}]
  %s1 = inlined_call_operand.vmem [shape: f32[2,32,128], index: 1, kind: input, shape index: {}]
  %s2 = inlined_call_operand.vmem [shape: f32[2,32,128], index: 2, kind: input, shape index: {}, may-alias: {2,3}]
  %s3 = inlined_call_operand.vmem [shape: f32[2,32,128], index: 3, kind: output, shape index: {}, may-alias: {2,3}]
  %s4 = sld [smem:[#allocation0]]
  $region41: #{cfg_combine.1} parent=0
    _
  %s6 = ssub.s32 1, %s4
  %s7 = scalar_select 0, %s6, %s4
  %s9 = sshll.u32 %s0, 4
  %s10 = int_to_ptr.vmem [resolvable:$true] %s9
  %12 = dma.vmem_to_smem %s10, 16, [#allocation3], [#allocation2]
  %14 = dma.done [#allocation2], 16
  %15 = sfence
  loop: start=0, step=1, limit=4
  $region2: #{cfg_combine.1} parent=0 // loop_pre_header
    _
  $region3: #{cfg_combine.1} parent=0 // loop_header
    %s17 = sphi 0, %s21
    %p18 = scmp.ge.s32.totalorder %s17, 4
    %s24 = sphi 0, %s36
    %s25 = sphi 0, %s32
    %s26 = sphi 0, %s24
    %s27 = sphi 0, %s25
    %s28 = sphi 0, %s26
    %s29 = sphi 0, %s27
    %s41 = sphi 0, %s43
    %s44 = sphi 0, %s41
    %s45 = sphi 0, %s44
    %s61 = sphi 0, %s45
    %s69 = sphi 0, %s71
    %s72 = sphi 0, %s69
    %s73 = sphi 0, %s72
    %s89 = sphi 0, %s73
    %s97 = sphi 0, %s99
    %s100 = sphi 0, %s97
    %s101 = sphi 0, %s100
    %s117 = sphi 0, %s101
  $region4: #{cfg_combine.1} parent=0 // loop_header_branch
    %20 = sbr.rel (%p18) target = $region8
  $region5: #{cfg_combine.1} parent=0 // loop_body
    %s22 = ssub.s32 %s17, 1
    %s23 = ssub.s32 %s17, 2
    %s30 = sadd.s32 1, %s25
    %p31 = scmp.ge.s32.totalorder %s30, 1
    %s32 = scalar_select %p31, 0, %s30
    %s33 = sadd.s32 1, %s24
    %s34 = scalar_select %p31, %s33, %s24
    %p35 = scmp.ge.s32.totalorder %s34, 2
    %s36 = scalar_select %p35, 0, %s34
    %s37 = ssub.s32 %s24, %s36
    %s38 = ssub.s32 %s25, %s32
    %s39 = sor.u32 %s37, %s38
    %p40 = scmp.eq.s32.totalorder %s39, 0
    %s42 = sadd.s32 %s41, 1
    %s43 = scalar_select %p40, %s41, %s42
    %p46 = pneg %p40
    %p47 = scmp.eq.s32.totalorder %s17, 1
    %p48 = por %p46, %p47
    %p49 = scmp.ne.s32.totalorder %s41, %s44
    %p50 = scmp.eq.s32.totalorder %s17, 0
    %p51 = por %p49, %p50
    %p52 = scmp.ne.s32.totalorder %s41, %s44
    %p53 = scmp.eq.s32.totalorder %s22, 1
    %p54 = por %p52, %p53
    %p55 = scmp.ne.s32.totalorder %s44, %s45
    %p56 = scmp.eq.s32.totalorder %s22, 0
    %p57 = por %p55, %p56
    %p58 = scmp.ne.s32.totalorder %s44, %s45
    %p59 = scmp.eq.s32.totalorder %s23, 1
    %p60 = por %p58, %p59
    %p62 = scmp.ne.s32.totalorder %s45, %s61
    %p63 = scmp.eq.s32.totalorder %s23, 0
    %p64 = por %p62, %p63
    %s65 = ssub.s32 %s24, %s36
    %s66 = ssub.s32 %s25, %s32
    %s67 = sor.u32 %s65, %s66
    %p68 = scmp.eq.s32.totalorder %s67, 0
    %s70 = sadd.s32 %s69, 1
    %s71 = scalar_select %p68, %s69, %s70
    %p74 = pneg %p68
    %p75 = scmp.eq.s32.totalorder %s17, 1
    %p76 = por %p74, %p75
    %p77 = scmp.ne.s32.totalorder %s69, %s72
    %p78 = scmp.eq.s32.totalorder %s17, 0
    %p79 = por %p77, %p78
    %p80 = scmp.ne.s32.totalorder %s69, %s72
    %p81 = scmp.eq.s32.totalorder %s22, 1
    %p82 = por %p80, %p81
    %p83 = scmp.ne.s32.totalorder %s72, %s73
    %p84 = scmp.eq.s32.totalorder %s22, 0
    %p85 = por %p83, %p84
    %p86 = scmp.ne.s32.totalorder %s72, %s73
    %p87 = scmp.eq.s32.totalorder %s23, 1
    %p88 = por %p86, %p87
    %p90 = scmp.ne.s32.totalorder %s73, %s89
    %p91 = scmp.eq.s32.totalorder %s23, 0
    %p92 = por %p90, %p91
    %s93 = ssub.s32 %s24, %s36
    %s94 = ssub.s32 %s25, %s32
    %s95 = sor.u32 %s93, %s94
    %p96 = scmp.eq.s32.totalorder %s95, 0
    %s98 = sadd.s32 %s97, 1
    %s99 = scalar_select %p96, %s97, %s98
    %p102 = pneg %p96
    %p103 = scmp.eq.s32.totalorder %s17, 1
    %p104 = por %p102, %p103
    %p105 = scmp.ne.s32.totalorder %s97, %s100
    %p106 = scmp.eq.s32.totalorder %s17, 0
    %p107 = por %p105, %p106
    %p108 = scmp.ne.s32.totalorder %s97, %s100
    %p109 = scmp.eq.s32.totalorder %s22, 1
    %p110 = por %p108, %p109
    %p111 = scmp.ne.s32.totalorder %s100, %s101
    %p112 = scmp.eq.s32.totalorder %s22, 0
    %p113 = por %p111, %p112
    %p114 = scmp.ne.s32.totalorder %s100, %s101
    %p115 = scmp.eq.s32.totalorder %s23, 1
    %p116 = por %p114, %p115
    %p118 = scmp.ne.s32.totalorder %s101, %s117
    %p119 = scmp.eq.s32.totalorder %s23, 0
    %p120 = por %p118, %p119
    %p121 = scmp.le.s32.totalorder 1, %s17
    %p122 = scmp.lt.s32.totalorder %s17, 3
    %p123 = pnand %p121, %p122
    %p124 = pneg %p123
    // Predicated region
    $region9: #{cfg_combine.1} parent=5 // pred_check
      _
    $region10: #{cfg_combine.1} parent=5 // pred_check_branch
      %126 = sbr.rel (%p123) target = $region12
    $region11: #{cfg_combine.1} parent=5 // pred_region
      %s127 = ssub.s32 %s17, 1
    $region12: #{cfg_combine.1} parent=5 // pred_fallthru
      _
    %p128 = scmp.lt.s32.totalorder %s17, 2
    // Predicated region
    $region13: #{cfg_combine.1} parent=5 // pred_check
      %p129 = pneg %p128
    $region14: #{cfg_combine.1} parent=5 // pred_check_branch
      %131 = sbr.rel (%p129) target = $region16
    $region15: #{cfg_combine.1} parent=5 // pred_region
      // Predicated region
      $region17: #{cfg_combine.1} parent=15 // pred_check
        %p132 = pneg %p51
      $region18: #{cfg_combine.1} parent=15 // pred_check_branch
        %134 = sbr.rel (%p132) target = $region20
      $region19: #{cfg_combine.1} parent=15 // pred_region
        %s135 = smul.u32 4, %s25
        %p136 = scmp.lt.s32.totalorder %s24, 1
        %s137 = scalar_select %p136, %s24, 1
        %p138 = scmp.lt.s32.totalorder %s135, 3
        %s139 = scalar_select %p138, %s135, 3
        %s140 = smul.addr %s137, 4
        %s141 = sadd.s32 %s139, %s140
        %s142 = smul.addr %s141, 8
        %s143 = scalar_lea.vmem %s1, %s142
        %s144 = smul.u32 4, %s25
      $region20: #{cfg_combine.1} parent=15 // pred_fallthru
        _
      // Predicated region
      $region21: #{cfg_combine.1} parent=15 // pred_check
        %p145 = pneg %p79
      $region22: #{cfg_combine.1} parent=15 // pred_check_branch
        %147 = sbr.rel (%p145) target = $region24
      $region23: #{cfg_combine.1} parent=15 // pred_region
        %s148 = smul.u32 4, %s25
        %p149 = scmp.lt.s32.totalorder %s24, 1
        %s150 = scalar_select %p149, %s24, 1
        %p151 = scmp.lt.s32.totalorder %s148, 3
        %s152 = scalar_select %p151, %s148, 3
        %s153 = smul.addr %s150, 4
        %s154 = sadd.s32 %s152, %s153
        %s155 = smul.addr %s154, 8
        %s156 = scalar_lea.vmem %s2, %s155
        %s157 = smul.u32 4, %s25
      $region24: #{cfg_combine.1} parent=15 // pred_fallthru
        _
    $region16: #{cfg_combine.1} parent=5 // pred_fallthru
      _
    %p158 = scmp.le.s32.totalorder 1, %s17
    %p159 = scmp.lt.s32.totalorder %s17, 3
    %p160 = pnand %p158, %p159
    %p161 = pneg %p160
    // Predicated region
    $region25: #{cfg_combine.1} parent=5 // pred_check
      _
    $region26: #{cfg_combine.1} parent=5 // pred_check_branch
      %163 = sbr.rel (%p160) target = $region28
    $region27: #{cfg_combine.1} parent=5 // pred_region
      %s164 = ssub.s32 %s17, 1
      %s165 = smul.u32 4, %s27
      %p166 = scmp.lt.s32.totalorder %s26, 1
      %s167 = scalar_select %p166, %s26, 1
      %p168 = scmp.lt.s32.totalorder %s165, 3
      %s169 = scalar_select %p168, %s165, 3
      %s170 = smul.addr %s167, 4
      %s171 = sadd.s32 %s169, %s170
      %s172 = smul.addr %s171, 8
      %s173 = scalar_lea.vmem %s1, %s172
      %p174 = pneg %p57
      %p175 = pneg %p54
      %s176 = smul.u32 4, %s27
      %p177 = scmp.lt.s32.totalorder %s26, 1
      %s178 = scalar_select %p177, %s26, 1
      %p179 = scmp.lt.s32.totalorder %s176, 3
      %s180 = scalar_select %p179, %s176, 3
      %s181 = smul.addr %s178, 4
      %s182 = sadd.s32 %s180, %s181
      %s183 = smul.addr %s182, 8
      %s184 = scalar_lea.vmem %s2, %s183
      %p185 = pneg %p85
      %p186 = pneg %p82
      %p187 = pneg %p113
      %p188 = pneg %p110
      %s189 = smul.u32 4, %s27
      %p190 = scmp.lt.s32.totalorder %s26, 1
      %s191 = scalar_select %p190, %s26, 1
      %p192 = scmp.lt.s32.totalorder %s189, 3
      %s193 = scalar_select %p192, %s189, 3
      %s194 = smul.addr %s191, 4
      %s195 = sadd.s32 %s193, %s194
      %s196 = smul.addr %s195, 8
      %s197 = scalar_lea.vmem %s3, %s196
      %s198 = smul.u32 4, %s27
      %p199 = scmp.lt.s32.totalorder %s26, 1
      %s200 = scalar_select %p199, %s26, 1
      %p201 = scmp.lt.s32.totalorder %s198, 3
      %s202 = scalar_select %p201, %s198, 3
      %s203 = smul.addr %s200, 4
      %s204 = sadd.s32 %s202, %s203
      %s205 = smul.addr %s204, 8
      %s206 = scalar_lea.vmem %s1, %s205
      %s207 = smul.u32 4, %s27
      %s208 = smul.u32 4, %s27
      %p209 = scmp.lt.s32.totalorder %s26, 1
      %s210 = scalar_select %p209, %s26, 1
      %p211 = scmp.lt.s32.totalorder %s208, 3
      %s212 = scalar_select %p211, %s208, 3
      %s213 = smul.addr %s210, 4
      %s214 = sadd.s32 %s212, %s213
      %s215 = smul.addr %s214, 8
      %s216 = scalar_lea.vmem %s2, %s215
      %s217 = smul.u32 4, %s27
      %s218 = smul.u32 4, %s27
      %p219 = scmp.lt.s32.totalorder %s26, 1
      %s220 = scalar_select %p219, %s26, 1
      %p221 = scmp.lt.s32.totalorder %s218, 3
      %s222 = scalar_select %p221, %s218, 3
      %s223 = smul.addr %s220, 4
      %s224 = sadd.s32 %s222, %s223
      %s225 = smul.addr %s224, 8
      %s226 = scalar_lea.vmem %s3, %s225
      %s227 = smul.u32 4, %s27
      %s228 = sld [smem:[#allocation3 + %s26]]
      %v229 = vld [vmem:[%s206] sm:$0xff]
      %v230 = vld [vmem:[%s206 + $0x8] sm:$0xff]
      %v231 = vld [vmem:[%s206 + $0x10] sm:$0xff]
      %v232 = vld [vmem:[%s206 + $0x18] sm:$0xff]
      %v233 = vld [vmem:[%s216] sm:$0xff]
      %v234 = vld [vmem:[%s216 + $0x8] sm:$0xff]
      %v235 = vld [vmem:[%s216 + $0x10] sm:$0xff]
      %v236 = vld [vmem:[%s216 + $0x18] sm:$0xff]
      %v237 = vsub.f32 %v229, %v233
      %v238 = vsub.f32 %v230, %v234
      %v239 = vsub.f32 %v231, %v235
      %v240 = vsub.f32 %v232, %v236
      %v241 = vstv %s228
      %v242 = vmul.f32 %v241, %v237
      %v243 = vmul.f32 %v241, %v238
      %v244 = vmul.f32 %v241, %v239
      %v245 = vmul.f32 %v241, %v240
      %v246 = vadd.f32 %v233, %v242
      %v247 = vadd.f32 %v234, %v243
      %v248 = vadd.f32 %v235, %v244
      %v249 = vadd.f32 %v236, %v245
      %250 = vst [vmem:[%s226] sm:$0xff] %v246
      %251 = vst [vmem:[%s226 + $0x8] sm:$0xff] %v247
      %252 = vst [vmem:[%s226 + $0x10] sm:$0xff] %v248
      %253 = vst [vmem:[%s226 + $0x18] sm:$0xff] %v249
      %s254 = smul.u32 4, %s27
      %p255 = scmp.lt.s32.totalorder %s26, 1
      %s256 = scalar_select %p255, %s26, 1
      %p257 = scmp.lt.s32.totalorder %s254, 3
      %s258 = scalar_select %p257, %s254, 3
      %s259 = smul.addr %s256, 4
      %s260 = sadd.s32 %s258, %s259
      %s261 = smul.addr %s260, 8
      %s262 = scalar_lea.vmem %s3, %s261
      // Predicated region
      $region29: #{cfg_combine.1} parent=27 // pred_check
        %p263 = pneg %p110
      $region30: #{cfg_combine.1} parent=27 // pred_check_branch
        %265 = sbr.rel (%p263) target = $region32
      $region31: #{cfg_combine.1} parent=27 // pred_region
        %s266 = smul.u32 4, %s27
      $region32: #{cfg_combine.1} parent=27 // pred_fallthru
        _
    $region28: #{cfg_combine.1} parent=5 // pred_fallthru
      _
    %p267 = scmp.le.s32.totalorder 2, %s17
    // Predicated region
    $region33: #{cfg_combine.1} parent=5 // pred_check
      %p268 = pneg %p267
    $region34: #{cfg_combine.1} parent=5 // pred_check_branch
      %270 = sbr.rel (%p268) target = $region36
    $region35: #{cfg_combine.1} parent=5 // pred_region
      %s271 = ssub.s32 %s17, 2
      // Predicated region
      $region37: #{cfg_combine.1} parent=35 // pred_check
        %p272 = pneg %p116
      $region38: #{cfg_combine.1} parent=35 // pred_check_branch
        %274 = sbr.rel (%p272) target = $region40
      $region39: #{cfg_combine.1} parent=35 // pred_region
        %s275 = smul.u32 4, %s29
        %p276 = scmp.lt.s32.totalorder %s28, 1
        %s277 = scalar_select %p276, %s28, 1
        %p278 = scmp.lt.s32.totalorder %s275, 3
        %s279 = scalar_select %p278, %s275, 3
        %s280 = smul.addr %s277, 4
        %s281 = sadd.s32 %s279, %s280
        %s282 = smul.addr %s281, 8
        %s283 = scalar_lea.vmem %s3, %s282
      $region40: #{cfg_combine.1} parent=35 // pred_fallthru
        _
    $region36: #{cfg_combine.1} parent=5 // pred_fallthru
      _
  $region6: #{cfg_combine.1} parent=0 // loop_footer
    %s21 = sadd.s32 1, %s17
  $region7: #{cfg_combine.1} parent=0 // loop_footer_branch
    %16 = sbr.rel target = $region3
  $region8: #{cfg_combine.1} parent=0 // loop_exit
    _

</llo_original>
